<compile_context>
chip_gen: v7x
topology: tpu7x:2x2x1
jax: 0.10.0
libtpu: 0.0.40
codegen_flags: <defaults>
</compile_context>

<pallas_src>
import jax
import jax.numpy as jnp
from jax.experimental import pallas as pl
from jax.experimental.pallas import tpu as pltpu


def _round_up(n, m):
    return ((n + m - 1) // m) * m


def _softplus(z):
    # numerically stable softplus: max(z, 0) + log(1 + exp(-|z|))
    return jnp.maximum(z, 0.0) + jnp.log(1.0 + jnp.exp(-jnp.abs(z)))


# ----------------------------- kernels ---------------------------------------


def _lossb_dense_kernel(x_ref, dw_ref, s_ref, db_ref, out_ref):
    """Dense softplus path.

    x_ref : (tb, 128)      streamed, f32 or bf16
    dw_ref: (1, 128)       resident, f32 (w1 - w0)
    s_ref : (tb//128, 128) lane-dense sign (+-1, 0 marks padded rows)
    db_ref: (1, 1)         SMEM scalar (b1 - b0)
    out_ref: (1, 128)      lane-dense per-tile partial sums
    """
    x = x_ref[...].astype(jnp.float32)
    # Row dot product: VPU mul + lane reduce (stays below the x DMA cost).
    d_col = jnp.sum(x * dw_ref[...], axis=-1, keepdims=True)        # (tb, 1)
    g, l = s_ref.shape
    d = d_col.reshape(g, l) + db_ref[0, 0]                           # relayout -> dense
    s = s_ref[...]
    z = s * d
    per = _softplus(z)
    # Padded / OOB rows carry s == 0; the select also kills any inf/NaN coming
    # from garbage x data in the clamped tail block.
    per = jnp.where(s != 0.0, per, 0.0)
    # Sublane-only reduce -> lane-dense (1, 128) partial; wrapper sums lanes+tiles.
    out_ref[...] = jnp.sum(per, axis=0, keepdims=True)


def _lossb_sparse_kernel(x_ref, dw_ref, s_ref, db_ref, out_ref):
    """Fallback: identical math with every per-row op on a (tb, 1) column."""
    x = x_ref[...].astype(jnp.float32)
    d = jnp.sum(x * dw_ref[...], axis=-1, keepdims=True) + db_ref[0, 0]   # (tb, 1)
    s = s_ref[...]                                                        # (tb, 1)
    z = s * d
    per = _softplus(z)
    per = jnp.where(s != 0.0, per, 0.0)
    total = jnp.sum(per, keepdims=True)                                   # (1, 1)
    out_ref[...] = jnp.broadcast_to(total, (1, 128))   # wrapper reads lane 0 only


# ----------------------------- wrapper ----------------------------------------


def _lossb_impl(x2, labels, dw, db, *, tile_b, dense):
    """x2: (B, D) f32/bf16, labels: (B,) int, dw: (1, D) f32, db: (1, 1) f32."""
    B, D = x2.shape
    tb = min(_round_up(B, 128), _round_up(max(int(tile_b), 128), 128))
    num_tiles = pl.cdiv(B, tb)
    b_pad = num_tiles * tb

    # Sign vector: +1 for class 0, -1 for class 1, 0 for padded rows (tail mask).
    s = 1.0 - 2.0 * labels.astype(jnp.float32)
    s = jnp.pad(s, (0, b_pad - B))
    if dense:
        s = s.reshape(b_pad // 128, 128)                       # lane-dense layout
        s_spec = pl.BlockSpec((tb // 128, 128), lambda i: (i, 0))
        kernel = _lossb_dense_kernel
        s_tile_bytes = tb * 4
    else:
        s = s.reshape(b_pad, 1)
        s_spec = pl.BlockSpec((tb, 1), lambda i: (i, 0))
        kernel = _lossb_sparse_kernel
        s_tile_bytes = tb * 512      # (tb,1) f32 block is lane-padded to 128 lanes

    x_tile_bytes = tb * D * x2.dtype.itemsize
    # 2 pipeline buffers per streamed input + resident dw/out blocks + headroom.
    vmem_limit = int(min(max(3 * (x_tile_bytes + s_tile_bytes) + (2 << 20), 16 << 20),
                         56 << 20))

    partials = pl.pallas_call(
        kernel,
        out_shape=jax.ShapeDtypeStruct((num_tiles, 128), jnp.float32),
        grid=(num_tiles,),
        in_specs=[
            pl.BlockSpec((tb, D), lambda i: (i, 0)),             # x: streamed
            pl.BlockSpec((1, D), lambda i: (0, 0)),              # dw: resident
            s_spec,                                              # sign vector
            pl.BlockSpec(memory_space=pltpu.MemorySpace.SMEM),   # db scalar
        ],
        out_specs=pl.BlockSpec((1, 128), lambda i: (i, 0)),      # lane-dense partials
        compiler_params=pltpu.CompilerParams(
            dimension_semantics=("parallel",),   # no cross-step carry -> megacore split
            vmem_limit_bytes=vmem_limit,
        ),
    )(x2, dw, s, db)

    if dense:
        loss_sum = jnp.sum(partials)            # each tile spread over 128 lanes
    else:
        loss_sum = jnp.sum(partials[:, 0])      # scalar replicated across lanes
    return loss_sum / jnp.float32(B)


_DENSE_OK = None


def _dense_path_supported():
    """One-time probe: does the (tb,1)->(tb/128,128) in-kernel relayout lower?"""
    global _DENSE_OK
    if _DENSE_OK is None:
        try:
            key = jax.random.PRNGKey(42)
            xp = jax.random.normal(key, (256, 128), dtype=jnp.float32)
            lp = jnp.arange(256, dtype=jnp.int32) % 2
            dwp = jnp.linspace(-1.0, 1.0, 128, dtype=jnp.float32).reshape(1, 128)
            dbp = jnp.full((1, 1), 0.25, dtype=jnp.float32)
            got = jax.block_until_ready(
                _lossb_impl(xp, lp, dwp, dbp, tile_b=256, dense=True))
            want = jnp.mean(_softplus((1.0 - 2.0 * lp) * (xp @ dwp[0] + dbp[0, 0])))
            _DENSE_OK = bool(jnp.allclose(got, want, atol=1e-5, rtol=1e-5))
        except Exception:
            _DENSE_OK = False
    return _DENSE_OK


def lossB_pallas(x, labels, weight, bias, *, tile_b=8192):
    """x: (B, 1, 128), labels: (B,) int, weight: (2, 128), bias: (2,) -> mean CE."""
    x2 = jnp.squeeze(x, axis=1)                    # (B, 128)
    if x2.dtype != jnp.bfloat16:                   # keep bf16 as-is (half HBM traffic)
        x2 = x2.astype(jnp.float32)
    w = weight.astype(jnp.float32)
    b = bias.astype(jnp.float32)
    dw = (w[1] - w[0]).reshape(1, x2.shape[1])     # (1, 128)
    db = (b[1] - b[0]).reshape(1, 1)               # (1, 1), lives in SMEM
    return _lossb_impl(x2, labels, dw, db, tile_b=tile_b,
                       dense=_dense_path_supported())


# ----------------------------- reference & test -------------------------------


def _reference(x, labels, weight, bias):
    # pure-JAX reference (matches nn.CrossEntropyLoss, mean reduction)
    x2 = jnp.squeeze(x, axis=1).astype(jnp.float32)
    logits = x2 @ weight.astype(jnp.float32).T + bias.astype(jnp.float32)
    logz = jax.nn.logsumexp(logits, axis=-1)
    picked = jnp.take_along_axis(
        logits, labels.astype(jnp.int32)[:, None], axis=-1)[:, 0]
    return jnp.mean(logz - picked)


if __name__ == "__main__":
    key = jax.random.PRNGKey(0)
    k_x1, k_l1, k_x2, k_l2, k_w, k_b = jax.random.split(key, 6)

    # deterministic nn.Linear(128, 2)-shaped params (synthetic init)
    bound = 1.0 / jnp.sqrt(128.0)
    weight = jax.random.uniform(k_w, (2, 128), minval=-bound, maxval=bound,
                                dtype=jnp.float32)
    bias = jax.random.uniform(k_b, (2,), minval=-bound, maxval=bound,
                              dtype=jnp.float32)

    # case 1: small batch, single padded 128-row tile (exercises the s==0 mask)
    B1 = 16
    x1 = jax.random.normal(k_x1, (B1, 1, 128), dtype=jnp.float32)
    lab1 = jax.random.randint(k_l1, (B1,), 0, 2, dtype=jnp.int32)
    loss1 = jax.block_until_ready(lossB_pallas(x1, lab1, weight, bias))
    ref1 = _reference(x1, lab1, weight, bias)
    assert jnp.allclose(loss1, ref1, atol=1e-5, rtol=1e-5), (loss1, ref1)

    # case 2: ragged multi-tile grid (exercises parallel per-tile partial sums)
    B2 = 300
    x2 = jax.random.normal(k_x2, (B2, 1, 128), dtype=jnp.float32)
    lab2 = jax.random.randint(k_l2, (B2,), 0, 2, dtype=jnp.int32)
    loss2 = jax.block_until_ready(lossB_pallas(x2, lab2, weight, bias, tile_b=128))
    ref2 = _reference(x2, lab2, weight, bias)
    assert jnp.allclose(loss2, ref2, atol=1e-5, rtol=1e-5), (loss2, ref2)

    print("KERNEL_OK")
</pallas_src>

<mosaic_0001>
module attributes {stable_mosaic.version = 11 : i64} {
  func.func @_lossb_dense_kernel(%arg0: i32, %arg1: memref<256x128xf32, #tpu.memory_space<vmem>>, %arg2: memref<1x128xf32, #tpu.memory_space<vmem>>, %arg3: memref<2x128xf32, #tpu.memory_space<vmem>>, %arg4: memref<1x1xf32, #tpu.memory_space<smem>>, %arg5: memref<1x128xf32, #tpu.memory_space<vmem>>) attributes {dimension_semantics = [#tpu.dimension_semantics<parallel>], iteration_bounds = array<i64: 1>, scalar_prefetch = 0 : i64, scratch_operands = 0 : i64, tpu.core_type = #tpu.core_type<tc>, window_params = [{transform_indices = @transform_0, window_bounds = array<i64: 256, 128>}, {pipeline_mode = #tpu.pipeline_mode<synchronous>, transform_indices = @transform_1, window_bounds = array<i64: 1, 128>}, {transform_indices = @transform_2, window_bounds = array<i64: 2, 128>}, {transform_indices = @transform_3, window_bounds = array<i64: 1, 1>}, {transform_indices = @transform_4, window_bounds = array<i64: 1, 128>}]} {
    %c0 = arith.constant 0 : index
    %c0_0 = arith.constant 0 : index
    %0 = vector.load %arg1[%c0, %c0_0] : memref<256x128xf32, #tpu.memory_space<vmem>>, vector<256x128xf32>
    %c0_1 = arith.constant 0 : index
    %c0_2 = arith.constant 0 : index
    %1 = vector.load %arg2[%c0_1, %c0_2] : memref<1x128xf32, #tpu.memory_space<vmem>>, vector<1x128xf32>
    %2 = vector.broadcast %1 : vector<1x128xf32> to vector<256x128xf32>
    %3 = arith.mulf %0, %2 : vector<256x128xf32>
    %cst = arith.constant dense<0.000000e+00> : vector<256xf32>
    %4 = vector.multi_reduction <add>, %3, %cst [1] : vector<256x128xf32> to vector<256xf32>
    %5 = vector.shape_cast %4 : vector<256xf32> to vector<256x1xf32>
    %6 = vector.shape_cast %5 : vector<256x1xf32> to vector<2x128xf32>
    %c0_3 = arith.constant 0 : index
    %c0_4 = arith.constant 0 : index
    %7 = memref.load %arg4[%c0_3, %c0_4] : memref<1x1xf32, #tpu.memory_space<smem>>
    %8 = vector.broadcast %7 : f32 to vector<2x128xf32>
    %9 = arith.addf %6, %8 : vector<2x128xf32>
    %c0_5 = arith.constant 0 : index
    %c0_6 = arith.constant 0 : index
    %10 = vector.load %arg3[%c0_5, %c0_6] : memref<2x128xf32, #tpu.memory_space<vmem>>, vector<2x128xf32>
    %11 = arith.mulf %10, %9 : vector<2x128xf32>
    %cst_7 = arith.constant 0.000000e+00 : f32
    %12 = vector.broadcast %cst_7 : f32 to vector<2x128xf32>
    %13 = arith.maximumf %11, %12 : vector<2x128xf32>
    %14 = math.absf %11 : vector<2x128xf32>
    %cst_8 = arith.constant 0.000000e+00 : f32
    %15 = vector.broadcast %cst_8 : f32 to vector<2x128xf32>
    %16 = arith.subf %15, %14 : vector<2x128xf32>
    %17 = math.exp %16 : vector<2x128xf32>
    %cst_9 = arith.constant 1.000000e+00 : f32
    %18 = vector.broadcast %cst_9 : f32 to vector<2x128xf32>
    %19 = arith.addf %18, %17 : vector<2x128xf32>
    %20 = math.log %19 : vector<2x128xf32>
    %21 = arith.addf %13, %20 : vector<2x128xf32>
    %cst_10 = arith.constant 0.000000e+00 : f32
    %22 = vector.broadcast %cst_10 : f32 to vector<2x128xf32>
    %23 = arith.cmpf one, %10, %22 : vector<2x128xf32>
    %cst_11 = arith.constant 0.000000e+00 : f32
    %24 = vector.broadcast %cst_11 : f32 to vector<2x128xf32>
    %25 = arith.select %23, %21, %24 : vector<2x128xi1>, vector<2x128xf32>
    %cst_12 = arith.constant dense<0.000000e+00> : vector<128xf32>
    %26 = vector.multi_reduction <add>, %25, %cst_12 [0] : vector<2x128xf32> to vector<128xf32>
    %27 = vector.shape_cast %26 : vector<128xf32> to vector<1x128xf32>
    %c0_13 = arith.constant 0 : index
    %c0_14 = arith.constant 0 : index
    %28 = vector.load %arg5[%c0_13, %c0_14] : memref<1x128xf32, #tpu.memory_space<vmem>>, vector<1x128xf32>
    tpu.vector_store %arg5[%c0_13, %c0_14], %27 {strides = array<i32>} : memref<1x128xf32, #tpu.memory_space<vmem>>, vector<1x128xf32>,
    return
  }
  func.func @transform_0(%arg0: i32) -> (i32, i32) {
    %c0_i32 = arith.constant 0 : i32
    %c0_i32_0 = arith.constant 0 : i32
    return %arg0, %c0_i32 : i32, i32
  }
  func.func @transform_1(%arg0: i32) -> (i32, i32) {
    %c0_i32 = arith.constant 0 : i32
    %c0_i32_0 = arith.constant 0 : i32
    %c0_i32_1 = arith.constant 0 : i32
    return %c0_i32, %c0_i32_0 : i32, i32
  }
  func.func @transform_2(%arg0: i32) -> (i32, i32) {
    %c0_i32 = arith.constant 0 : i32
    %c0_i32_0 = arith.constant 0 : i32
    return %arg0, %c0_i32 : i32, i32
  }
  func.func @transform_3(%arg0: i32) -> (i32, i32) {
    %c0_i32 = arith.constant 0 : i32
    %c0_i32_0 = arith.constant 0 : i32
    %c0_i32_1 = arith.constant 0 : i32
    return %c0_i32, %c0_i32_0 : i32, i32
  }
  func.func @transform_4(%arg0: i32) -> (i32, i32) {
    %c0_i32 = arith.constant 0 : i32
    %c0_i32_0 = arith.constant 0 : i32
    return %arg0, %c0_i32 : i32, i32
  }
}

module attributes {stable_mosaic.version = 11 : i64} {
  func.func @_lossb_sparse_kernel(%arg0: i32, %arg1: memref<128x128xf32, #tpu.memory_space<vmem>>, %arg2: memref<1x128xf32, #tpu.memory_space<vmem>>, %arg3: memref<128x1xf32, #tpu.memory_space<vmem>>, %arg4: memref<1x1xf32, #tpu.memory_space<smem>>, %arg5: memref<1x128xf32, #tpu.memory_space<vmem>>) attributes {dimension_semantics = [#tpu.dimension_semantics<parallel>], iteration_bounds = array<i64: 1>, scalar_prefetch = 0 : i64, scratch_operands = 0 : i64, tpu.core_type = #tpu.core_type<tc>, window_params = [{transform_indices = @transform_0, window_bounds = array<i64: 128, 128>}, {pipeline_mode = #tpu.pipeline_mode<synchronous>, transform_indices = @transform_1, window_bounds = array<i64: 1, 128>}, {transform_indices = @transform_2, window_bounds = array<i64: 128, 1>}, {transform_indices = @transform_3, window_bounds = array<i64: 1, 1>}, {transform_indices = @transform_4, window_bounds = array<i64: 1, 128>}]} {
    %c0 = arith.constant 0 : index
    %c0_0 = arith.constant 0 : index
    %0 = vector.load %arg1[%c0, %c0_0] : memref<128x128xf32, #tpu.memory_space<vmem>>, vector<128x128xf32>
    %c0_1 = arith.constant 0 : index
    %c0_2 = arith.constant 0 : index
    %1 = vector.load %arg2[%c0_1, %c0_2] : memref<1x128xf32, #tpu.memory_space<vmem>>, vector<1x128xf32>
    %2 = vector.broadcast %1 : vector<1x128xf32> to vector<128x128xf32>
    %3 = arith.mulf %0, %2 : vector<128x128xf32>
    %cst = arith.constant dense<0.000000e+00> : vector<128xf32>
    %4 = vector.multi_reduction <add>, %3, %cst [1] : vector<128x128xf32> to vector<128xf32>
    %5 = vector.shape_cast %4 : vector<128xf32> to vector<128x1xf32>
    %c0_3 = arith.constant 0 : index
    %c0_4 = arith.constant 0 : index
    %6 = memref.load %arg4[%c0_3, %c0_4] : memref<1x1xf32, #tpu.memory_space<smem>>
    %7 = vector.broadcast %6 : f32 to vector<128x1xf32>
    %8 = arith.addf %5, %7 : vector<128x1xf32>
    %c0_5 = arith.constant 0 : index
    %c0_6 = arith.constant 0 : index
    %9 = vector.load %arg3[%c0_5, %c0_6] : memref<128x1xf32, #tpu.memory_space<vmem>>, vector<128x1xf32>
    %10 = arith.mulf %9, %8 : vector<128x1xf32>
    %cst_7 = arith.constant 0.000000e+00 : f32
    %11 = vector.broadcast %cst_7 : f32 to vector<128x1xf32>
    %12 = arith.maximumf %10, %11 : vector<128x1xf32>
    %13 = math.absf %10 : vector<128x1xf32>
    %cst_8 = arith.constant 0.000000e+00 : f32
    %14 = vector.broadcast %cst_8 : f32 to vector<128x1xf32>
    %15 = arith.subf %14, %13 : vector<128x1xf32>
    %16 = math.exp %15 : vector<128x1xf32>
    %cst_9 = arith.constant 1.000000e+00 : f32
    %17 = vector.broadcast %cst_9 : f32 to vector<128x1xf32>
    %18 = arith.addf %17, %16 : vector<128x1xf32>
    %19 = math.log %18 : vector<128x1xf32>
    %20 = arith.addf %12, %19 : vector<128x1xf32>
    %cst_10 = arith.constant 0.000000e+00 : f32
    %21 = vector.broadcast %cst_10 : f32 to vector<128x1xf32>
    %22 = arith.cmpf one, %9, %21 : vector<128x1xf32>
    %cst_11 = arith.constant 0.000000e+00 : f32
    %23 = vector.broadcast %cst_11 : f32 to vector<128x1xf32>
    %24 = arith.select %22, %20, %23 : vector<128x1xi1>, vector<128x1xf32>
    %25 = vector.shape_cast %24 : vector<128x1xf32> to vector<1x128x1xf32>
    %cst_12 = arith.constant dense<0.000000e+00> : vector<1xf32>
    %26 = vector.multi_reduction <add>, %25, %cst_12 [1, 2] : vector<1x128x1xf32> to vector<1xf32>
    %27 = vector.shape_cast %26 : vector<1xf32> to vector<1x1x1xf32>
    %28 = vector.extract %27[0, 0, 0] : f32 from vector<1x1x1xf32>
    %29 = vector.broadcast %28 : f32 to vector<1x1xf32>
    %30 = vector.shape_cast %29 : vector<1x1xf32> to vector<1x1xf32>
    %31 = vector.broadcast %30 : vector<1x1xf32> to vector<1x128xf32>
    %c0_13 = arith.constant 0 : index
    %c0_14 = arith.constant 0 : index
    %32 = vector.load %arg5[%c0_13, %c0_14] : memref<1x128xf32, #tpu.memory_space<vmem>>, vector<1x128xf32>
    tpu.vector_store %arg5[%c0_13, %c0_14], %31 {strides = array<i32>} : memref<1x128xf32, #tpu.memory_space<vmem>>, vector<1x128xf32>,
    return
  }
  func.func @transform_0(%arg0: i32) -> (i32, i32) {
    %c0_i32 = arith.constant 0 : i32
    %c0_i32_0 = arith.constant 0 : i32
    return %arg0, %c0_i32 : i32, i32
  }
  func.func @transform_1(%arg0: i32) -> (i32, i32) {
    %c0_i32 = arith.constant 0 : i32
    %c0_i32_0 = arith.constant 0 : i32
    %c0_i32_1 = arith.constant 0 : i32
    return %c0_i32, %c0_i32_0 : i32, i32
  }
  func.func @transform_2(%arg0: i32) -> (i32, i32) {
    %c0_i32 = arith.constant 0 : i32
    %c0_i32_0 = arith.constant 0 : i32
    return %arg0, %c0_i32 : i32, i32
  }
  func.func @transform_3(%arg0: i32) -> (i32, i32) {
    %c0_i32 = arith.constant 0 : i32
    %c0_i32_0 = arith.constant 0 : i32
    %c0_i32_1 = arith.constant 0 : i32
    return %c0_i32, %c0_i32_0 : i32, i32
  }
  func.func @transform_4(%arg0: i32) -> (i32, i32) {
    %c0_i32 = arith.constant 0 : i32
    %c0_i32_0 = arith.constant 0 : i32
    return %arg0, %c0_i32 : i32, i32
  }
}

</mosaic_0001>

<llo_original>
// kernel: tpu_custom_call.1
$region0: #{tpu_custom_call.1}
  #allocation0 [shape = 'u32[]', space=smem, size = 0x4, offset = 0x4, fixed_abs, tag = 'smem constant byte address 0x4 - core index']
  #allocation1 [shape = 'u32[144,128]{1,0:T(1,128)}', space=vmem, size = 0x12000, scoped, tag = 'internal scratch']
  #allocation2 [shape = 'f32[1,1]{1,0:T(1,128)S(6)}', space=smem, size = 0x200, scoped, tag = 'scoped memory for tpu_custom_call.1']
  %s0 = inlined_call_operand.hbm [shape: f32[256,128], index: 0, kind: input, shape index: {}]
  %s1 = inlined_call_operand.vmem [shape: f32[1,128], index: 1, kind: input, shape index: {}]
  %s2 = inlined_call_operand.vmem [shape: f32[2,128], index: 2, kind: input, shape index: {}]
  %s3 = inlined_call_operand.<no memory space> [shape: f32[1,1], index: 3, kind: input, shape index: {}]
  %s4 = inlined_call_operand.hbm [shape: f32[1,128], index: 4, kind: output, shape index: {}]
  %s5 = sld [smem:[#allocation0]]
  $region30: #{tpu_custom_call.1} parent=0
    _
  %s7 = ssub.s32 1, %s5
  %s8 = scalar_select 0, %s7, %s5
  %9 = sst [smem:[#allocation2]] %s3
  $region1: #{tpu_custom_call.1} parent=0
    #allocation3 [shape = 'u8[131072]{0}', space=vmem, size = 0x20000, scoped, tag = 'input window, operand 0, single buffered']
    #allocation4 [shape = 's32[1]{0}', space=sflag, size = 0x4, scoped, tag = 'scoped memory for tpu_custom_call.1']
    #allocation5 [shape = 's32[1]{0}', space=sflag, size = 0x4, scoped, tag = 'scoped memory for tpu_custom_call.1']
    #allocation6 [shape = 'u8[512]{0}', space=vmem, size = 0x400, scoped, tag = 'output window, operand 0, single buffered']
    %10 = vsyncpa [#allocation4], 0
    %11 = vsyncpa [#allocation5], 0
    // Predicated region
    $region2: #{tpu_custom_call.1} parent=1 // pred_check
      _
    $region3: #{tpu_custom_call.1} parent=1 // pred_check_branch
      %13 = sbr.rel (0) target = $region5
    $region4: #{tpu_custom_call.1} parent=1 // pred_region
      %s15 = ssub.s32 4096, 4096
      %16 = vsyncadd [#allocation4], %s15
      %s17 = sshll.u32 [#allocation3], 4
      %s18 = int_to_ptr.vmem [resolvable:$true] %s17
      %23 = dma.hbm_to_vmem [thread:$0]  %s0, 4096, %s18, [#allocation4], 128, 128, 8
    $region5: #{tpu_custom_call.1} parent=1 // pred_fallthru
      _
    // Predicated region
    $region6: #{tpu_custom_call.1} parent=1 // pred_check
      _
    $region7: #{tpu_custom_call.1} parent=1 // pred_check_branch
      %25 = sbr.rel (0) target = $region9
    $region8: #{tpu_custom_call.1} parent=1 // pred_region
      _
    $region9: #{tpu_custom_call.1} parent=1 // pred_fallthru
      _
    // Predicated region
    $region10: #{tpu_custom_call.1} parent=1 // pred_check
      _
    $region11: #{tpu_custom_call.1} parent=1 // pred_check_branch
      %27 = sbr.rel (0) target = $region13
    $region12: #{tpu_custom_call.1} parent=1 // pred_region
      _
    $region13: #{tpu_custom_call.1} parent=1 // pred_fallthru
      _
    // Predicated region
    $region14: #{tpu_custom_call.1} parent=1 // pred_check
      _
    $region15: #{tpu_custom_call.1} parent=1 // pred_check_branch
      %29 = sbr.rel (0) target = $region17
    $region16: #{tpu_custom_call.1} parent=1 // pred_region
      _
    $region17: #{tpu_custom_call.1} parent=1 // pred_fallthru
      _
    // Predicated region
    $region18: #{tpu_custom_call.1} parent=1 // pred_check
      _
    $region19: #{tpu_custom_call.1} parent=1 // pred_check_branch
      %31 = sbr.rel (0) target = $region21
    $region20: #{tpu_custom_call.1} parent=1 // pred_region
      %32 = dma.done [#allocation4], 4096
    $region21: #{tpu_custom_call.1} parent=1 // pred_fallthru
      _
    %v33 = vld [vmem:[#allocation3] sm:$0xff]
    %v34 = vld [vmem:[#allocation3 + $0x8] sm:$0xff]
    %v35 = vld [vmem:[#allocation3 + $0x10] sm:$0xff]
    %v36 = vld [vmem:[#allocation3 + $0x18] sm:$0xff]
    %v37 = vld [vmem:[#allocation3 + $0x20] sm:$0xff]
    %v38 = vld [vmem:[#allocation3 + $0x28] sm:$0xff]
    %v39 = vld [vmem:[#allocation3 + $0x30] sm:$0xff]
    %v40 = vld [vmem:[#allocation3 + $0x38] sm:$0xff]
    %v41 = vld [vmem:[#allocation3 + $0x40] sm:$0xff]
    %v42 = vld [vmem:[#allocation3 + $0x48] sm:$0xff]
    %v43 = vld [vmem:[#allocation3 + $0x50] sm:$0xff]
    %v44 = vld [vmem:[#allocation3 + $0x58] sm:$0xff]
    %v45 = vld [vmem:[#allocation3 + $0x60] sm:$0xff]
    %v46 = vld [vmem:[#allocation3 + $0x68] sm:$0xff]
    %v47 = vld [vmem:[#allocation3 + $0x70] sm:$0xff]
    %v48 = vld [vmem:[#allocation3 + $0x78] sm:$0xff]
    %v49 = vld [vmem:[#allocation3 + $0x80] sm:$0xff]
    %v50 = vld [vmem:[#allocation3 + $0x88] sm:$0xff]
    %v51 = vld [vmem:[#allocation3 + $0x90] sm:$0xff]
    %v52 = vld [vmem:[#allocation3 + $0x98] sm:$0xff]
    %v53 = vld [vmem:[#allocation3 + $0xa0] sm:$0xff]
    %v54 = vld [vmem:[#allocation3 + $0xa8] sm:$0xff]
    %v55 = vld [vmem:[#allocation3 + $0xb0] sm:$0xff]
    %v56 = vld [vmem:[#allocation3 + $0xb8] sm:$0xff]
    %v57 = vld [vmem:[#allocation3 + $0xc0] sm:$0xff]
    %v58 = vld [vmem:[#allocation3 + $0xc8] sm:$0xff]
    %v59 = vld [vmem:[#allocation3 + $0xd0] sm:$0xff]
    %v60 = vld [vmem:[#allocation3 + $0xd8] sm:$0xff]
    %v61 = vld [vmem:[#allocation3 + $0xe0] sm:$0xff]
    %v62 = vld [vmem:[#allocation3 + $0xe8] sm:$0xff]
    %v63 = vld [vmem:[#allocation3 + $0xf0] sm:$0xff]
    %v64 = vld [vmem:[#allocation3 + $0xf8] sm:$0xff]
    %v65 = vld [vmem:[%s1] sm:$0x1]
    %v67 = vlaneseq
    %v68 = vshrl.u32 %v67, 7
    %v69 = vsub.s32 0, %v68
    %v70 = vrot.slane %v65, %v69
    %v72 = vmul.f32 %v33, %v70
    %v73 = vmul.f32 %v34, %v70
    %v74 = vmul.f32 %v35, %v70
    %v75 = vmul.f32 %v36, %v70
    %v76 = vmul.f32 %v37, %v70
    %v77 = vmul.f32 %v38, %v70
    %v78 = vmul.f32 %v39, %v70
    %v79 = vmul.f32 %v40, %v70
    %v80 = vmul.f32 %v41, %v70
    %v81 = vmul.f32 %v42, %v70
    %v82 = vmul.f32 %v43, %v70
    %v83 = vmul.f32 %v44, %v70
    %v84 = vmul.f32 %v45, %v70
    %v85 = vmul.f32 %v46, %v70
    %v86 = vmul.f32 %v47, %v70
    %v87 = vmul.f32 %v48, %v70
    %v88 = vmul.f32 %v49, %v70
    %v89 = vmul.f32 %v50, %v70
    %v90 = vmul.f32 %v51, %v70
    %v91 = vmul.f32 %v52, %v70
    %v92 = vmul.f32 %v53, %v70
    %v93 = vmul.f32 %v54, %v70
    %v94 = vmul.f32 %v55, %v70
    %v95 = vmul.f32 %v56, %v70
    %v96 = vmul.f32 %v57, %v70
    %v97 = vmul.f32 %v58, %v70
    %v98 = vmul.f32 %v59, %v70
    %v99 = vmul.f32 %v60, %v70
    %v100 = vmul.f32 %v61, %v70
    %v101 = vmul.f32 %v62, %v70
    %v102 = vmul.f32 %v63, %v70
    %v103 = vmul.f32 %v64, %v70
    %104 = vadd.xlane.f32.xlu0 %v72
    %v105 = vpop.xlane.xlu0 %104
    %106 = vadd.xlane.f32.xlu0 %v73
    %v107 = vpop.xlane.xlu0 %106
    %108 = vadd.xlane.f32.xlu0 %v74
    %v109 = vpop.xlane.xlu0 %108
    %110 = vadd.xlane.f32.xlu0 %v75
    %v111 = vpop.xlane.xlu0 %110
    %112 = vadd.xlane.f32.xlu0 %v76
    %v113 = vpop.xlane.xlu0 %112
    %114 = vadd.xlane.f32.xlu0 %v77
    %v115 = vpop.xlane.xlu0 %114
    %116 = vadd.xlane.f32.xlu0 %v78
    %v117 = vpop.xlane.xlu0 %116
    %118 = vadd.xlane.f32.xlu0 %v79
    %v119 = vpop.xlane.xlu0 %118
    %120 = vadd.xlane.f32.xlu0 %v80
    %v121 = vpop.xlane.xlu0 %120
    %122 = vadd.xlane.f32.xlu0 %v81
    %v123 = vpop.xlane.xlu0 %122
    %124 = vadd.xlane.f32.xlu0 %v82
    %v125 = vpop.xlane.xlu0 %124
    %126 = vadd.xlane.f32.xlu0 %v83
    %v127 = vpop.xlane.xlu0 %126
    %128 = vadd.xlane.f32.xlu0 %v84
    %v129 = vpop.xlane.xlu0 %128
    %130 = vadd.xlane.f32.xlu0 %v85
    %v131 = vpop.xlane.xlu0 %130
    %132 = vadd.xlane.f32.xlu0 %v86
    %v133 = vpop.xlane.xlu0 %132
    %134 = vadd.xlane.f32.xlu0 %v87
    %v135 = vpop.xlane.xlu0 %134
    %136 = vadd.xlane.f32.xlu0 %v88
    %v137 = vpop.xlane.xlu0 %136
    %138 = vadd.xlane.f32.xlu0 %v89
    %v139 = vpop.xlane.xlu0 %138
    %140 = vadd.xlane.f32.xlu0 %v90
    %v141 = vpop.xlane.xlu0 %140
    %142 = vadd.xlane.f32.xlu0 %v91
    %v143 = vpop.xlane.xlu0 %142
    %144 = vadd.xlane.f32.xlu0 %v92
    %v145 = vpop.xlane.xlu0 %144
    %146 = vadd.xlane.f32.xlu0 %v93
    %v147 = vpop.xlane.xlu0 %146
    %148 = vadd.xlane.f32.xlu0 %v94
    %v149 = vpop.xlane.xlu0 %148
    %150 = vadd.xlane.f32.xlu0 %v95
    %v151 = vpop.xlane.xlu0 %150
    %152 = vadd.xlane.f32.xlu0 %v96
    %v153 = vpop.xlane.xlu0 %152
    %154 = vadd.xlane.f32.xlu0 %v97
    %v155 = vpop.xlane.xlu0 %154
    %156 = vadd.xlane.f32.xlu0 %v98
    %v157 = vpop.xlane.xlu0 %156
    %158 = vadd.xlane.f32.xlu0 %v99
    %v159 = vpop.xlane.xlu0 %158
    %160 = vadd.xlane.f32.xlu0 %v100
    %v161 = vpop.xlane.xlu0 %160
    %162 = vadd.xlane.f32.xlu0 %v101
    %v163 = vpop.xlane.xlu0 %162
    %164 = vadd.xlane.f32.xlu0 %v102
    %v165 = vpop.xlane.xlu0 %164
    %166 = vadd.xlane.f32.xlu0 %v103
    %v167 = vpop.xlane.xlu0 %166
    %s168 = sld [smem:[#allocation2]]
    %v169 = vstv %s168
    %v170 = vadd.f32 %v105, %v169
    %v171 = vadd.f32 %v107, %v169
    %v172 = vadd.f32 %v109, %v169
    %v173 = vadd.f32 %v111, %v169
    %v174 = vadd.f32 %v113, %v169
    %v175 = vadd.f32 %v115, %v169
    %v176 = vadd.f32 %v117, %v169
    %v177 = vadd.f32 %v119, %v169
    %v178 = vadd.f32 %v121, %v169
    %v179 = vadd.f32 %v123, %v169
    %v180 = vadd.f32 %v125, %v169
    %v181 = vadd.f32 %v127, %v169
    %v182 = vadd.f32 %v129, %v169
    %v183 = vadd.f32 %v131, %v169
    %v184 = vadd.f32 %v133, %v169
    %v185 = vadd.f32 %v135, %v169
    %v186 = vadd.f32 %v137, %v169
    %v187 = vadd.f32 %v139, %v169
    %v188 = vadd.f32 %v141, %v169
    %v189 = vadd.f32 %v143, %v169
    %v190 = vadd.f32 %v145, %v169
    %v191 = vadd.f32 %v147, %v169
    %v192 = vadd.f32 %v149, %v169
    %v193 = vadd.f32 %v151, %v169
    %v194 = vadd.f32 %v153, %v169
    %v195 = vadd.f32 %v155, %v169
    %v196 = vadd.f32 %v157, %v169
    %v197 = vadd.f32 %v159, %v169
    %v198 = vadd.f32 %v161, %v169
    %v199 = vadd.f32 %v163, %v169
    %v200 = vadd.f32 %v165, %v169
    %v201 = vadd.f32 %v167, %v169
    %v202 = vld [vmem:[%s2] sm:$0x3]
    %v235 = vlaneseq
    %v236 = vand.u32 %v235, 127
    %v237 = vlaneseq
    %v238 = vshrl.u32 %v237, 7
    %v239 = vsub.s32 %v236, %v238
    %v240 = vrot.slane %v170, %v239
    %v241 = vadd.s32 %v236, 4294967288
    %v242 = vlaneseq
    %v243 = vshrl.u32 %v242, 7
    %v244 = vsub.s32 %v241, %v243
    %v245 = vrot.slane %v171, %v244
    %vm246 = vcmask 130112
    %v247 = vsel %vm246, %v245, %v240
    %v248 = vadd.s32 %v236, 4294967280
    %v249 = vlaneseq
    %v250 = vshrl.u32 %v249, 7
    %v251 = vsub.s32 %v248, %v250
    %v252 = vrot.slane %v172, %v251
    %vm253 = vcmask 195712
    %v254 = vsel %vm253, %v252, %v247
    %v255 = vadd.s32 %v236, 4294967272
    %v256 = vlaneseq
    %v257 = vshrl.u32 %v256, 7
    %v258 = vsub.s32 %v255, %v257
    %v259 = vrot.slane %v173, %v258
    %vm260 = vcmask 261312
    %v261 = vsel %vm260, %v259, %v254
    %v262 = vadd.s32 %v236, 4294967264
    %v263 = vlaneseq
    %v264 = vshrl.u32 %v263, 7
    %v265 = vsub.s32 %v262, %v264
    %v266 = vrot.slane %v174, %v265
    %vm267 = vcmask 326912
    %v268 = vsel %vm267, %v266, %v261
    %v269 = vadd.s32 %v236, 4294967256
    %v270 = vlaneseq
    %v271 = vshrl.u32 %v270, 7
    %v272 = vsub.s32 %v269, %v271
    %v273 = vrot.slane %v175, %v272
    %vm274 = vcmask 392512
    %v275 = vsel %vm274, %v273, %v268
    %v276 = vadd.s32 %v236, 4294967248
    %v277 = vlaneseq
    %v278 = vshrl.u32 %v277, 7
    %v279 = vsub.s32 %v276, %v278
    %v280 = vrot.slane %v176, %v279
    %vm281 = vcmask 458112
    %v282 = vsel %vm281, %v280, %v275
    %v283 = vadd.s32 %v236, 4294967240
    %v284 = vlaneseq
    %v285 = vshrl.u32 %v284, 7
    %v286 = vsub.s32 %v283, %v285
    %v287 = vrot.slane %v177, %v286
    %vm288 = vcmask 523712
    %v289 = vsel %vm288, %v287, %v282
    %v290 = vadd.s32 %v236, 4294967232
    %v291 = vlaneseq
    %v292 = vshrl.u32 %v291, 7
    %v293 = vsub.s32 %v290, %v292
    %v294 = vrot.slane %v178, %v293
    %vm295 = vcmask 589312
    %v296 = vsel %vm295, %v294, %v289
    %v297 = vadd.s32 %v236, 4294967224
    %v298 = vlaneseq
    %v299 = vshrl.u32 %v298, 7
    %v300 = vsub.s32 %v297, %v299
    %v301 = vrot.slane %v179, %v300
    %vm302 = vcmask 654912
    %v303 = vsel %vm302, %v301, %v296
    %v304 = vadd.s32 %v236, 4294967216
    %v305 = vlaneseq
    %v306 = vshrl.u32 %v305, 7
    %v307 = vsub.s32 %v304, %v306
    %v308 = vrot.slane %v180, %v307
    %vm309 = vcmask 720512
    %v310 = vsel %vm309, %v308, %v303
    %v311 = vadd.s32 %v236, 4294967208
    %v312 = vlaneseq
    %v313 = vshrl.u32 %v312, 7
    %v314 = vsub.s32 %v311, %v313
    %v315 = vrot.slane %v181, %v314
    %vm316 = vcmask 786112
    %v317 = vsel %vm316, %v315, %v310
    %v318 = vadd.s32 %v236, 4294967200
    %v319 = vlaneseq
    %v320 = vshrl.u32 %v319, 7
    %v321 = vsub.s32 %v318, %v320
    %v322 = vrot.slane %v182, %v321
    %vm323 = vcmask 851712
    %v324 = vsel %vm323, %v322, %v317
    %v325 = vadd.s32 %v236, 4294967192
    %v326 = vlaneseq
    %v327 = vshrl.u32 %v326, 7
    %v328 = vsub.s32 %v325, %v327
    %v329 = vrot.slane %v183, %v328
    %vm330 = vcmask 917312
    %v331 = vsel %vm330, %v329, %v324
    %v332 = vadd.s32 %v236, 4294967184
    %v333 = vlaneseq
    %v334 = vshrl.u32 %v333, 7
    %v335 = vsub.s32 %v332, %v334
    %v336 = vrot.slane %v184, %v335
    %vm337 = vcmask 982912
    %v338 = vsel %vm337, %v336, %v331
    %v339 = vadd.s32 %v236, 4294967176
    %v340 = vlaneseq
    %v341 = vshrl.u32 %v340, 7
    %v342 = vsub.s32 %v339, %v341
    %v343 = vrot.slane %v185, %v342
    %vm344 = vcmask 1048512
    %v345 = vsel %vm344, %v343, %v338
    %v346 = vlaneseq
    %v347 = vshrl.u32 %v346, 7
    %v348 = vsub.s32 %v236, %v347
    %v349 = vrot.slane %v186, %v348
    %v350 = vlaneseq
    %v351 = vshrl.u32 %v350, 7
    %v352 = vsub.s32 %v241, %v351
    %v353 = vrot.slane %v187, %v352
    %v354 = vsel %vm246, %v353, %v349
    %v355 = vlaneseq
    %v356 = vshrl.u32 %v355, 7
    %v357 = vsub.s32 %v248, %v356
    %v358 = vrot.slane %v188, %v357
    %v359 = vsel %vm253, %v358, %v354
    %v360 = vlaneseq
    %v361 = vshrl.u32 %v360, 7
    %v362 = vsub.s32 %v255, %v361
    %v363 = vrot.slane %v189, %v362
    %v364 = vsel %vm260, %v363, %v359
    %v365 = vlaneseq
    %v366 = vshrl.u32 %v365, 7
    %v367 = vsub.s32 %v262, %v366
    %v368 = vrot.slane %v190, %v367
    %v369 = vsel %vm267, %v368, %v364
    %v370 = vlaneseq
    %v371 = vshrl.u32 %v370, 7
    %v372 = vsub.s32 %v269, %v371
    %v373 = vrot.slane %v191, %v372
    %v374 = vsel %vm274, %v373, %v369
    %v375 = vlaneseq
    %v376 = vshrl.u32 %v375, 7
    %v377 = vsub.s32 %v276, %v376
    %v378 = vrot.slane %v192, %v377
    %v379 = vsel %vm281, %v378, %v374
    %v380 = vlaneseq
    %v381 = vshrl.u32 %v380, 7
    %v382 = vsub.s32 %v283, %v381
    %v383 = vrot.slane %v193, %v382
    %v384 = vsel %vm288, %v383, %v379
    %v385 = vlaneseq
    %v386 = vshrl.u32 %v385, 7
    %v387 = vsub.s32 %v290, %v386
    %v388 = vrot.slane %v194, %v387
    %v389 = vsel %vm295, %v388, %v384
    %v390 = vlaneseq
    %v391 = vshrl.u32 %v390, 7
    %v392 = vsub.s32 %v297, %v391
    %v393 = vrot.slane %v195, %v392
    %v394 = vsel %vm302, %v393, %v389
    %v395 = vlaneseq
    %v396 = vshrl.u32 %v395, 7
    %v397 = vsub.s32 %v304, %v396
    %v398 = vrot.slane %v196, %v397
    %v399 = vsel %vm309, %v398, %v394
    %v400 = vlaneseq
    %v401 = vshrl.u32 %v400, 7
    %v402 = vsub.s32 %v311, %v401
    %v403 = vrot.slane %v197, %v402
    %v404 = vsel %vm316, %v403, %v399
    %v405 = vlaneseq
    %v406 = vshrl.u32 %v405, 7
    %v407 = vsub.s32 %v318, %v406
    %v408 = vrot.slane %v198, %v407
    %v409 = vsel %vm323, %v408, %v404
    %v410 = vlaneseq
    %v411 = vshrl.u32 %v410, 7
    %v412 = vsub.s32 %v325, %v411
    %v413 = vrot.slane %v199, %v412
    %v414 = vsel %vm330, %v413, %v409
    %v415 = vlaneseq
    %v416 = vshrl.u32 %v415, 7
    %v417 = vsub.s32 %v332, %v416
    %v418 = vrot.slane %v200, %v417
    %v419 = vsel %vm337, %v418, %v414
    %v420 = vlaneseq
    %v421 = vshrl.u32 %v420, 7
    %v422 = vsub.s32 %v339, %v421
    %v423 = vrot.slane %v201, %v422
    %v424 = vsel %vm344, %v423, %v419
    %vm425 = vcmask 1041409
    %v426 = vsel %vm425, %v424, %v345
    %v428 = vmul.f32 %v202, %v426
    %v429 = vmax.f32 %v428, 0.0
    %v430 = vand.u32 2147483647, %v428
    %v431 = vsub.f32 0.0, %v430
    %v432 = vmul.f32 %v431, 1.442695
    %v433 = vpow.pop %v432
    %v434 = vadd.f32 %v433, 1.0
    %v435 = vlog2.pop %v434
    %v436 = vmul.f32 %v435, 0.6931472
    %v437 = vadd.f32 %v429, %v436
    %vm438 = vcmp.ne.f32.partialorder %v202, 0.0
    %v439 = vsel %vm438, %v437, 0.0
    %vm440 = vcmask 1041408
    %v441 = vsel %vm440, %v439, 0.0
    %v442 = vrot.slane %v441, 4
    %v443 = vadd.f32 %v441, %v442
    %v444 = vrot.slane %v443, 2
    %v445 = vadd.f32 %v443, %v444
    %v446 = vrot.slane %v445, 1
    %v447 = vadd.f32 %v445, %v446
    %448 = vst [vmem:[#allocation6] sm:$0x1] %v447
    // Predicated region
    $region22: #{tpu_custom_call.1} parent=1 // pred_check
      _
    $region23: #{tpu_custom_call.1} parent=1 // pred_check_branch
      %450 = sbr.rel (0) target = $region25
    $region24: #{tpu_custom_call.1} parent=1 // pred_region
      %s452 = ssub.s32 16, 16
      %453 = vsyncadd [#allocation5], %s452
      %s455 = sshll.u32 [#allocation6], 4
      %s456 = int_to_ptr.vmem [resolvable:$true] %s455
      %458 = dma.vmem_to_hbm [thread:$0]  %s456, 16, %s4, [#allocation5]
    $region25: #{tpu_custom_call.1} parent=1 // pred_fallthru
      _
    // Predicated region
    $region26: #{tpu_custom_call.1} parent=1 // pred_check
      _
    $region27: #{tpu_custom_call.1} parent=1 // pred_check_branch
      %460 = sbr.rel (0) target = $region29
    $region28: #{tpu_custom_call.1} parent=1 // pred_region
      %461 = dma.done [#allocation5], 16
    $region29: #{tpu_custom_call.1} parent=1 // pred_fallthru
      _
    %462 = vsyncpa [#allocation4], 1
    %463 = vsyncpa [#allocation5], 1

// kernel: tpu_custom_call.1
$region0: #{tpu_custom_call.1}
  #allocation0 [shape = 'u32[]', space=smem, size = 0x4, offset = 0x4, fixed_abs, tag = 'smem constant byte address 0x4 - core index']
  #allocation1 [shape = 'u32[144,128]{1,0:T(1,128)}', space=vmem, size = 0x12000, scoped, tag = 'internal scratch']
  #allocation2 [shape = 'f32[1,1]{1,0:T(1,128)S(6)}', space=smem, size = 0x200, scoped, tag = 'scoped memory for tpu_custom_call.1']
  %s0 = inlined_call_operand.vmem [shape: f32[16,128], index: 0, kind: input, shape index: {}]
  %s1 = inlined_call_operand.vmem [shape: f32[1,128], index: 1, kind: input, shape index: {}]
  %s2 = inlined_call_operand.vmem [shape: f32[128,1], index: 2, kind: input, shape index: {}]
  %s3 = inlined_call_operand.<no memory space> [shape: f32[1,1], index: 3, kind: input, shape index: {}]
  %s4 = inlined_call_operand.hbm [shape: f32[1,128], index: 4, kind: output, shape index: {}]
  %s5 = sld [smem:[#allocation0]]
  $region26: #{tpu_custom_call.1} parent=0
    _
  %s7 = ssub.s32 1, %s5
  %s8 = scalar_select 0, %s7, %s5
  %9 = sst [smem:[#allocation2]] %s3
  $region1: #{tpu_custom_call.1} parent=0
    #allocation3 [shape = 'u8[512]{0}', space=vmem, size = 0x400, scoped, tag = 'output window, operand 0, single buffered']
    #allocation4 [shape = 's32[1]{0}', space=sflag, size = 0x4, scoped, tag = 'scoped memory for tpu_custom_call.1']
    %10 = vsyncpa [#allocation4], 0
    // Predicated region
    $region2: #{tpu_custom_call.1} parent=1 // pred_check
      _
    $region3: #{tpu_custom_call.1} parent=1 // pred_check_branch
      %12 = sbr.rel (0) target = $region5
    $region4: #{tpu_custom_call.1} parent=1 // pred_region
      _
    $region5: #{tpu_custom_call.1} parent=1 // pred_fallthru
      _
    // Predicated region
    $region6: #{tpu_custom_call.1} parent=1 // pred_check
      _
    $region7: #{tpu_custom_call.1} parent=1 // pred_check_branch
      %14 = sbr.rel (0) target = $region9
    $region8: #{tpu_custom_call.1} parent=1 // pred_region
      _
    $region9: #{tpu_custom_call.1} parent=1 // pred_fallthru
      _
    // Predicated region
    $region10: #{tpu_custom_call.1} parent=1 // pred_check
      _
    $region11: #{tpu_custom_call.1} parent=1 // pred_check_branch
      %16 = sbr.rel (0) target = $region13
    $region12: #{tpu_custom_call.1} parent=1 // pred_region
      _
    $region13: #{tpu_custom_call.1} parent=1 // pred_fallthru
      _
    // Predicated region
    $region14: #{tpu_custom_call.1} parent=1 // pred_check
      _
    $region15: #{tpu_custom_call.1} parent=1 // pred_check_branch
      %18 = sbr.rel (0) target = $region17
    $region16: #{tpu_custom_call.1} parent=1 // pred_region
      _
    $region17: #{tpu_custom_call.1} parent=1 // pred_fallthru
      _
    %v19 = vld [vmem:[%s0] sm:$0xff]
    %v20 = vld [vmem:[%s0 + $0x8] sm:$0xff]
    %v21 = vld [vmem:[%s0 + $0x10] sm:$0xff]
    %v22 = vld [vmem:[%s0 + $0x18] sm:$0xff]
    %v23 = vld [vmem:[%s0 + $0x20] sm:$0xff]
    %v24 = vld [vmem:[%s0 + $0x28] sm:$0xff]
    %v25 = vld [vmem:[%s0 + $0x30] sm:$0xff]
    %v26 = vld [vmem:[%s0 + $0x38] sm:$0xff]
    %v27 = vld [vmem:[%s0 + $0x40] sm:$0xff]
    %v28 = vld [vmem:[%s0 + $0x48] sm:$0xff]
    %v29 = vld [vmem:[%s0 + $0x50] sm:$0xff]
    %v30 = vld [vmem:[%s0 + $0x58] sm:$0xff]
    %v31 = vld [vmem:[%s0 + $0x60] sm:$0xff]
    %v32 = vld [vmem:[%s0 + $0x68] sm:$0xff]
    %v33 = vld [vmem:[%s0 + $0x70] sm:$0xff]
    %v34 = vld [vmem:[%s0 + $0x78] sm:$0xff]
    %v35 = vld [vmem:[%s1] sm:$0x1]
    %v37 = vlaneseq
    %v38 = vshrl.u32 %v37, 7
    %v39 = vsub.s32 0, %v38
    %v40 = vrot.slane %v35, %v39
    %v42 = vmul.f32 %v19, %v40
    %v43 = vmul.f32 %v20, %v40
    %v44 = vmul.f32 %v21, %v40
    %v45 = vmul.f32 %v22, %v40
    %v46 = vmul.f32 %v23, %v40
    %v47 = vmul.f32 %v24, %v40
    %v48 = vmul.f32 %v25, %v40
    %v49 = vmul.f32 %v26, %v40
    %v50 = vmul.f32 %v27, %v40
    %v51 = vmul.f32 %v28, %v40
    %v52 = vmul.f32 %v29, %v40
    %v53 = vmul.f32 %v30, %v40
    %v54 = vmul.f32 %v31, %v40
    %v55 = vmul.f32 %v32, %v40
    %v56 = vmul.f32 %v33, %v40
    %v57 = vmul.f32 %v34, %v40
    %58 = vadd.xlane.f32.xlu0 %v42
    %v59 = vpop.xlane.xlu0 %58
    %60 = vadd.xlane.f32.xlu0 %v43
    %v61 = vpop.xlane.xlu0 %60
    %62 = vadd.xlane.f32.xlu0 %v44
    %v63 = vpop.xlane.xlu0 %62
    %64 = vadd.xlane.f32.xlu0 %v45
    %v65 = vpop.xlane.xlu0 %64
    %66 = vadd.xlane.f32.xlu0 %v46
    %v67 = vpop.xlane.xlu0 %66
    %68 = vadd.xlane.f32.xlu0 %v47
    %v69 = vpop.xlane.xlu0 %68
    %70 = vadd.xlane.f32.xlu0 %v48
    %v71 = vpop.xlane.xlu0 %70
    %72 = vadd.xlane.f32.xlu0 %v49
    %v73 = vpop.xlane.xlu0 %72
    %74 = vadd.xlane.f32.xlu0 %v50
    %v75 = vpop.xlane.xlu0 %74
    %76 = vadd.xlane.f32.xlu0 %v51
    %v77 = vpop.xlane.xlu0 %76
    %78 = vadd.xlane.f32.xlu0 %v52
    %v79 = vpop.xlane.xlu0 %78
    %80 = vadd.xlane.f32.xlu0 %v53
    %v81 = vpop.xlane.xlu0 %80
    %82 = vadd.xlane.f32.xlu0 %v54
    %v83 = vpop.xlane.xlu0 %82
    %84 = vadd.xlane.f32.xlu0 %v55
    %v85 = vpop.xlane.xlu0 %84
    %86 = vadd.xlane.f32.xlu0 %v56
    %v87 = vpop.xlane.xlu0 %86
    %88 = vadd.xlane.f32.xlu0 %v57
    %v89 = vpop.xlane.xlu0 %88
    %s90 = sld [smem:[#allocation2]]
    %v91 = vstv %s90
    %v92 = vadd.f32 %v59, %v91
    %v93 = vadd.f32 %v61, %v91
    %v94 = vadd.f32 %v63, %v91
    %v95 = vadd.f32 %v65, %v91
    %v96 = vadd.f32 %v67, %v91
    %v97 = vadd.f32 %v69, %v91
    %v98 = vadd.f32 %v71, %v91
    %v99 = vadd.f32 %v73, %v91
    %v100 = vadd.f32 %v75, %v91
    %v101 = vadd.f32 %v77, %v91
    %v102 = vadd.f32 %v79, %v91
    %v103 = vadd.f32 %v81, %v91
    %v104 = vadd.f32 %v83, %v91
    %v105 = vadd.f32 %v85, %v91
    %v106 = vadd.f32 %v87, %v91
    %v107 = vadd.f32 %v89, %v91
    %v108 = vld [vmem:[%s2] sm:$0xff]
    %v109 = vld [vmem:[%s2 + $0x8] sm:$0xff]
    %v110 = vld [vmem:[%s2 + $0x10] sm:$0xff]
    %v111 = vld [vmem:[%s2 + $0x18] sm:$0xff]
    %v112 = vld [vmem:[%s2 + $0x20] sm:$0xff]
    %v113 = vld [vmem:[%s2 + $0x28] sm:$0xff]
    %v114 = vld [vmem:[%s2 + $0x30] sm:$0xff]
    %v115 = vld [vmem:[%s2 + $0x38] sm:$0xff]
    %v116 = vld [vmem:[%s2 + $0x40] sm:$0xff]
    %v117 = vld [vmem:[%s2 + $0x48] sm:$0xff]
    %v118 = vld [vmem:[%s2 + $0x50] sm:$0xff]
    %v119 = vld [vmem:[%s2 + $0x58] sm:$0xff]
    %v120 = vld [vmem:[%s2 + $0x60] sm:$0xff]
    %v121 = vld [vmem:[%s2 + $0x68] sm:$0xff]
    %v122 = vld [vmem:[%s2 + $0x70] sm:$0xff]
    %v123 = vld [vmem:[%s2 + $0x78] sm:$0xff]
    %v124 = vmul.f32 %v108, %v92
    %v125 = vmul.f32 %v109, %v93
    %v126 = vmul.f32 %v110, %v94
    %v127 = vmul.f32 %v111, %v95
    %v128 = vmul.f32 %v112, %v96
    %v129 = vmul.f32 %v113, %v97
    %v130 = vmul.f32 %v114, %v98
    %v131 = vmul.f32 %v115, %v99
    %v132 = vmul.f32 %v116, %v100
    %v133 = vmul.f32 %v117, %v101
    %v134 = vmul.f32 %v118, %v102
    %v135 = vmul.f32 %v119, %v103
    %v136 = vmul.f32 %v120, %v104
    %v137 = vmul.f32 %v121, %v105
    %v138 = vmul.f32 %v122, %v106
    %v139 = vmul.f32 %v123, %v107
    %v140 = vmax.f32 %v124, 0.0
    %v141 = vmax.f32 %v125, 0.0
    %v142 = vmax.f32 %v126, 0.0
    %v143 = vmax.f32 %v127, 0.0
    %v144 = vmax.f32 %v128, 0.0
    %v145 = vmax.f32 %v129, 0.0
    %v146 = vmax.f32 %v130, 0.0
    %v147 = vmax.f32 %v131, 0.0
    %v148 = vmax.f32 %v132, 0.0
    %v149 = vmax.f32 %v133, 0.0
    %v150 = vmax.f32 %v134, 0.0
    %v151 = vmax.f32 %v135, 0.0
    %v152 = vmax.f32 %v136, 0.0
    %v153 = vmax.f32 %v137, 0.0
    %v154 = vmax.f32 %v138, 0.0
    %v155 = vmax.f32 %v139, 0.0
    %v156 = vand.u32 2147483647, %v124
    %v157 = vand.u32 2147483647, %v125
    %v158 = vand.u32 2147483647, %v126
    %v159 = vand.u32 2147483647, %v127
    %v160 = vand.u32 2147483647, %v128
    %v161 = vand.u32 2147483647, %v129
    %v162 = vand.u32 2147483647, %v130
    %v163 = vand.u32 2147483647, %v131
    %v164 = vand.u32 2147483647, %v132
    %v165 = vand.u32 2147483647, %v133
    %v166 = vand.u32 2147483647, %v134
    %v167 = vand.u32 2147483647, %v135
    %v168 = vand.u32 2147483647, %v136
    %v169 = vand.u32 2147483647, %v137
    %v170 = vand.u32 2147483647, %v138
    %v171 = vand.u32 2147483647, %v139
    %v172 = vsub.f32 0.0, %v156
    %v173 = vsub.f32 0.0, %v157
    %v174 = vsub.f32 0.0, %v158
    %v175 = vsub.f32 0.0, %v159
    %v176 = vsub.f32 0.0, %v160
    %v177 = vsub.f32 0.0, %v161
    %v178 = vsub.f32 0.0, %v162
    %v179 = vsub.f32 0.0, %v163
    %v180 = vsub.f32 0.0, %v164
    %v181 = vsub.f32 0.0, %v165
    %v182 = vsub.f32 0.0, %v166
    %v183 = vsub.f32 0.0, %v167
    %v184 = vsub.f32 0.0, %v168
    %v185 = vsub.f32 0.0, %v169
    %v186 = vsub.f32 0.0, %v170
    %v187 = vsub.f32 0.0, %v171
    %v188 = vmul.f32 %v172, 1.442695
    %v189 = vpow.pop %v188
    %v190 = vmul.f32 %v173, 1.442695
    %v191 = vpow.pop %v190
    %v192 = vmul.f32 %v174, 1.442695
    %v193 = vpow.pop %v192
    %v194 = vmul.f32 %v175, 1.442695
    %v195 = vpow.pop %v194
    %v196 = vmul.f32 %v176, 1.442695
    %v197 = vpow.pop %v196
    %v198 = vmul.f32 %v177, 1.442695
    %v199 = vpow.pop %v198
    %v200 = vmul.f32 %v178, 1.442695
    %v201 = vpow.pop %v200
    %v202 = vmul.f32 %v179, 1.442695
    %v203 = vpow.pop %v202
    %v204 = vmul.f32 %v180, 1.442695
    %v205 = vpow.pop %v204
    %v206 = vmul.f32 %v181, 1.442695
    %v207 = vpow.pop %v206
    %v208 = vmul.f32 %v182, 1.442695
    %v209 = vpow.pop %v208
    %v210 = vmul.f32 %v183, 1.442695
    %v211 = vpow.pop %v210
    %v212 = vmul.f32 %v184, 1.442695
    %v213 = vpow.pop %v212
    %v214 = vmul.f32 %v185, 1.442695
    %v215 = vpow.pop %v214
    %v216 = vmul.f32 %v186, 1.442695
    %v217 = vpow.pop %v216
    %v218 = vmul.f32 %v187, 1.442695
    %v219 = vpow.pop %v218
    %v220 = vadd.f32 %v189, 1.0
    %v221 = vadd.f32 %v191, 1.0
    %v222 = vadd.f32 %v193, 1.0
    %v223 = vadd.f32 %v195, 1.0
    %v224 = vadd.f32 %v197, 1.0
    %v225 = vadd.f32 %v199, 1.0
    %v226 = vadd.f32 %v201, 1.0
    %v227 = vadd.f32 %v203, 1.0
    %v228 = vadd.f32 %v205, 1.0
    %v229 = vadd.f32 %v207, 1.0
    %v230 = vadd.f32 %v209, 1.0
    %v231 = vadd.f32 %v211, 1.0
    %v232 = vadd.f32 %v213, 1.0
    %v233 = vadd.f32 %v215, 1.0
    %v234 = vadd.f32 %v217, 1.0
    %v235 = vadd.f32 %v219, 1.0
    %v236 = vlog2.pop %v220
    %v237 = vmul.f32 %v236, 0.6931472
    %v238 = vlog2.pop %v221
    %v239 = vmul.f32 %v238, 0.6931472
    %v240 = vlog2.pop %v222
    %v241 = vmul.f32 %v240, 0.6931472
    %v242 = vlog2.pop %v223
    %v243 = vmul.f32 %v242, 0.6931472
    %v244 = vlog2.pop %v224
    %v245 = vmul.f32 %v244, 0.6931472
    %v246 = vlog2.pop %v225
    %v247 = vmul.f32 %v246, 0.6931472
    %v248 = vlog2.pop %v226
    %v249 = vmul.f32 %v248, 0.6931472
    %v250 = vlog2.pop %v227
    %v251 = vmul.f32 %v250, 0.6931472
    %v252 = vlog2.pop %v228
    %v253 = vmul.f32 %v252, 0.6931472
    %v254 = vlog2.pop %v229
    %v255 = vmul.f32 %v254, 0.6931472
    %v256 = vlog2.pop %v230
    %v257 = vmul.f32 %v256, 0.6931472
    %v258 = vlog2.pop %v231
    %v259 = vmul.f32 %v258, 0.6931472
    %v260 = vlog2.pop %v232
    %v261 = vmul.f32 %v260, 0.6931472
    %v262 = vlog2.pop %v233
    %v263 = vmul.f32 %v262, 0.6931472
    %v264 = vlog2.pop %v234
    %v265 = vmul.f32 %v264, 0.6931472
    %v266 = vlog2.pop %v235
    %v267 = vmul.f32 %v266, 0.6931472
    %v268 = vadd.f32 %v140, %v237
    %v269 = vadd.f32 %v141, %v239
    %v270 = vadd.f32 %v142, %v241
    %v271 = vadd.f32 %v143, %v243
    %v272 = vadd.f32 %v144, %v245
    %v273 = vadd.f32 %v145, %v247
    %v274 = vadd.f32 %v146, %v249
    %v275 = vadd.f32 %v147, %v251
    %v276 = vadd.f32 %v148, %v253
    %v277 = vadd.f32 %v149, %v255
    %v278 = vadd.f32 %v150, %v257
    %v279 = vadd.f32 %v151, %v259
    %v280 = vadd.f32 %v152, %v261
    %v281 = vadd.f32 %v153, %v263
    %v282 = vadd.f32 %v154, %v265
    %v283 = vadd.f32 %v155, %v267
    %vm284 = vcmp.ne.f32.partialorder %v108, 0.0
    %vm285 = vcmp.ne.f32.partialorder %v109, 0.0
    %vm286 = vcmp.ne.f32.partialorder %v110, 0.0
    %vm287 = vcmp.ne.f32.partialorder %v111, 0.0
    %vm288 = vcmp.ne.f32.partialorder %v112, 0.0
    %vm289 = vcmp.ne.f32.partialorder %v113, 0.0
    %vm290 = vcmp.ne.f32.partialorder %v114, 0.0
    %vm291 = vcmp.ne.f32.partialorder %v115, 0.0
    %vm292 = vcmp.ne.f32.partialorder %v116, 0.0
    %vm293 = vcmp.ne.f32.partialorder %v117, 0.0
    %vm294 = vcmp.ne.f32.partialorder %v118, 0.0
    %vm295 = vcmp.ne.f32.partialorder %v119, 0.0
    %vm296 = vcmp.ne.f32.partialorder %v120, 0.0
    %vm297 = vcmp.ne.f32.partialorder %v121, 0.0
    %vm298 = vcmp.ne.f32.partialorder %v122, 0.0
    %vm299 = vcmp.ne.f32.partialorder %v123, 0.0
    %v300 = vsel %vm284, %v268, 0.0
    %v301 = vsel %vm285, %v269, 0.0
    %v302 = vsel %vm286, %v270, 0.0
    %v303 = vsel %vm287, %v271, 0.0
    %v304 = vsel %vm288, %v272, 0.0
    %v305 = vsel %vm289, %v273, 0.0
    %v306 = vsel %vm290, %v274, 0.0
    %v307 = vsel %vm291, %v275, 0.0
    %v308 = vsel %vm292, %v276, 0.0
    %v309 = vsel %vm293, %v277, 0.0
    %v310 = vsel %vm294, %v278, 0.0
    %v311 = vsel %vm295, %v279, 0.0
    %v312 = vsel %vm296, %v280, 0.0
    %v313 = vsel %vm297, %v281, 0.0
    %v314 = vsel %vm298, %v282, 0.0
    %v315 = vsel %vm299, %v283, 0.0
    %vm316 = vcmask 7168
    %v317 = vsel %vm316, %v300, 0.0
    %v318 = vsel %vm316, %v301, 0.0
    %v319 = vadd.f32 %v317, %v318
    %v320 = vsel %vm316, %v302, 0.0
    %v321 = vadd.f32 %v319, %v320
    %v322 = vsel %vm316, %v303, 0.0
    %v323 = vadd.f32 %v321, %v322
    %v324 = vsel %vm316, %v304, 0.0
    %v325 = vadd.f32 %v323, %v324
    %v326 = vsel %vm316, %v305, 0.0
    %v327 = vadd.f32 %v325, %v326
    %v328 = vsel %vm316, %v306, 0.0
    %v329 = vadd.f32 %v327, %v328
    %v330 = vsel %vm316, %v307, 0.0
    %v331 = vadd.f32 %v329, %v330
    %v332 = vsel %vm316, %v308, 0.0
    %v333 = vadd.f32 %v331, %v332
    %v334 = vsel %vm316, %v309, 0.0
    %v335 = vadd.f32 %v333, %v334
    %v336 = vsel %vm316, %v310, 0.0
    %v337 = vadd.f32 %v335, %v336
    %v338 = vsel %vm316, %v311, 0.0
    %v339 = vadd.f32 %v337, %v338
    %v340 = vsel %vm316, %v312, 0.0
    %v341 = vadd.f32 %v339, %v340
    %v342 = vsel %vm316, %v313, 0.0
    %v343 = vadd.f32 %v341, %v342
    %v344 = vsel %vm316, %v314, 0.0
    %v345 = vadd.f32 %v343, %v344
    %v346 = vsel %vm316, %v315, 0.0
    %v347 = vadd.f32 %v345, %v346
    %348 = vadd.xlane.f32.xlu0 %v347
    %v349 = vpop.xlane.xlu0 %348
    %v350 = vrot.slane %v349, 4
    %v351 = vadd.f32 %v349, %v350
    %v352 = vrot.slane %v351, 2
    %v353 = vadd.f32 %v351, %v352
    %v354 = vrot.slane %v353, 1
    %v355 = vadd.f32 %v353, %v354
    %s356 = vtos %v355
    %v357 = vstv %s356
    %358 = vst [vmem:[#allocation3] sm:$0x1] %v357
    // Predicated region
    $region18: #{tpu_custom_call.1} parent=1 // pred_check
      _
    $region19: #{tpu_custom_call.1} parent=1 // pred_check_branch
      %360 = sbr.rel (0) target = $region21
    $region20: #{tpu_custom_call.1} parent=1 // pred_region
      %s362 = ssub.s32 16, 16
      %363 = vsyncadd [#allocation4], %s362
      %s365 = sshll.u32 [#allocation3], 4
      %s366 = int_to_ptr.vmem [resolvable:$true] %s365
      %368 = dma.vmem_to_hbm [thread:$0]  %s366, 16, %s4, [#allocation4]
    $region21: #{tpu_custom_call.1} parent=1 // pred_fallthru
      _
    // Predicated region
    $region22: #{tpu_custom_call.1} parent=1 // pred_check
      _
    $region23: #{tpu_custom_call.1} parent=1 // pred_check_branch
      %370 = sbr.rel (0) target = $region25
    $region24: #{tpu_custom_call.1} parent=1 // pred_region
      %371 = dma.done [#allocation4], 16
    $region25: #{tpu_custom_call.1} parent=1 // pred_fallthru
      _
    %372 = vsyncpa [#allocation4], 1

</llo_original>
